<compile_context>
chip_gen: v7x
topology: tpu7x:2x2x1
jax: 0.10.0
libtpu: 0.0.40
codegen_flags: <defaults>
</compile_context>

<pallas_src>
import functools

import jax
import jax.numpy as jnp
from jax.experimental import pallas as pl
from jax.experimental.pallas import tpu as pltpu


def se_kernel(x_ref, w1_ref, w2_ref, b1_ref, b2_ref, o_ref, *, inv_hw):
    # x_ref : [Nb, C, HW]   activation slab (Nb batch rows, full spatial extent)
    # w1_ref: [C,  Cr]      conv1 weight with BN1 scale folded in (in, out)
    # w2_ref: [Cr, C]       conv2 weight with BN2 scale folded in (in, out)
    # b1_ref: [1, Cr]       folded BN1 bias
    # b2_ref: [1, C]        folded BN2 bias
    # o_ref : [1, Nb, C]    output block (row-dense store)
    # Global average pool: single spatial reduction per step, f32 accumulation.
    pooled = jnp.sum(x_ref[...].astype(jnp.float32), axis=-1) * inv_hw    # [Nb, C]
    # conv1 (1x1, BN1 scale folded) + bias -> ReLU
    h = jnp.dot(pooled, w1_ref[...], preferred_element_type=jnp.float32)
    h = jnp.maximum(h + b1_ref[...], 0.0)                                 # [Nb, Cr]
    # conv2 (1x1, BN2 scale folded) + bias -> hswish
    y = jnp.dot(h, w2_ref[...], preferred_element_type=jnp.float32)
    y = y + b2_ref[...]                                                   # [Nb, C]
    h_sig = jnp.clip(y + 3.0, 0.0, 6.0) * (1.0 / 6.0)                     # relu6(y+3)/6
    o_ref[0] = (y * h_sig).astype(o_ref.dtype)


def se_forward(x_nchw, params, *, x_vmem_budget=16 << 20):
    """x_nchw: [N, C, H, W]  ->  [N, C, 1, 1]   (same semantics as SE.forward)."""
    N, C, H, W = x_nchw.shape
    HW = H * W
    w1t, w2t, b1, b2 = params
    Cr = w1t.shape[1]

    itemsize = jnp.dtype(x_nchw.dtype).itemsize
    row_bytes = C * HW * itemsize

    # Batch rows per grid step: amortize per-step overhead (<= 8), stay within
    # the double-buffered x budget (v7x only has 64 MiB VMEM), and keep >= 2
    # grid steps when N > 1 so both v7x TensorCores get work.
    nb = min(8, N, max(1, x_vmem_budget // (2 * row_bytes)))
    if N > 1:
        nb = min(nb, -(-N // 2))
    nb = max(nb, 1)
    grid_n = -(-N // nb)

    x3 = x_nchw.reshape(N, C, HW)          # free reshape; no padded HBM copy

    kernel = functools.partial(se_kernel, inv_hw=1.0 / HW)

    params_bytes = 4 * (C * Cr + Cr * C + Cr + C)
    cost = pl.CostEstimate(
        flops=int(N * C * HW + 4 * N * C * Cr),
        transcendentals=0,
        bytes_accessed=int(N * C * HW * itemsize + params_bytes + N * C * itemsize),
    )

    # Explicit VMEM budget: double-buffered x slabs + (default double-buffered)
    # weights + output blocks + headroom; capped safely below v7x's 64 MiB.
    vmem_est = 2 * nb * row_bytes + 2 * params_bytes + 2 * nb * C * itemsize
    vmem_limit = int(min(max(vmem_est + (4 << 20), 32 << 20), 56 << 20))

    out = pl.pallas_call(
        kernel,
        out_shape=jax.ShapeDtypeStruct((grid_n, nb, C), x_nchw.dtype),
        grid_spec=pltpu.PrefetchScalarGridSpec(
            num_scalar_prefetch=0,
            grid=(grid_n,),
            in_specs=[
                pl.BlockSpec((nb, C, HW), lambda n: (n, 0, 0)),   # x slab (full HW)
                pl.BlockSpec((C, Cr), lambda n: (0, 0)),          # w1 (folded)
                pl.BlockSpec((Cr, C), lambda n: (0, 0)),          # w2 (folded)
                pl.BlockSpec((1, Cr), lambda n: (0, 0)),          # b1
                pl.BlockSpec((1, C), lambda n: (0, 0)),           # b2
            ],
            out_specs=pl.BlockSpec((1, nb, C), lambda n: (n, 0, 0)),
        ),
        compiler_params=pltpu.CompilerParams(
            dimension_semantics=("parallel",),
            vmem_limit_bytes=vmem_limit,
        ),
        cost_estimate=cost,
    )(x3, w1t, w2t, b1, b2)

    # Drop padded batch rows (when N % nb != 0) and restore [N, C, 1, 1].
    return out.reshape(grid_n * nb, C)[:N].reshape(N, C, 1, 1)


def make_raw_params(key, in_dim, reduction=4):
    """Deterministic synthetic parameters matching SE.__init__ shapes (torch layout)."""
    cr = in_dim // reduction
    ks = jax.random.split(key, 8)
    # conv weights: torch shape [out, in, 1, 1] -> stored as [out, in].
    w1 = jax.random.normal(ks[0], (cr, in_dim), jnp.float32) * 0.1
    w2 = jax.random.normal(ks[1], (in_dim, cr), jnp.float32) * 0.1
    # BatchNorm parameters (inference semantics with running statistics).
    g1 = 1.0 + 0.1 * jax.random.normal(ks[2], (cr,), jnp.float32)
    be1 = 0.1 * jax.random.normal(ks[3], (cr,), jnp.float32)
    m1 = 0.1 * jax.random.normal(ks[4], (cr,), jnp.float32)
    v1 = jax.random.uniform(ks[5], (cr,), jnp.float32, 0.5, 1.5)
    g2 = 1.0 + 0.1 * jax.random.normal(ks[6], (in_dim,), jnp.float32)
    be2 = 0.1 * jax.random.normal(ks[7], (in_dim,), jnp.float32)
    m2 = jnp.zeros((in_dim,), jnp.float32)
    v2 = jnp.ones((in_dim,), jnp.float32)
    return (w1, w2, g1, be1, m1, v1, g2, be2, m2, v2)


def fold_params(raw, eps=1e-5):
    """Fold inference BN (scale, bias) into the 1x1 conv weights for the kernel."""
    w1, w2, g1, be1, m1, v1, g2, be2, m2, v2 = raw
    s1 = g1 / jnp.sqrt(v1 + eps)
    b1 = be1 - m1 * s1
    s2 = g2 / jnp.sqrt(v2 + eps)
    b2 = be2 - m2 * s2
    w1t = jnp.transpose(w1) * s1[None, :]   # [C, Cr], BN1 scale folded into columns
    w2t = jnp.transpose(w2) * s2[None, :]   # [Cr, C], BN2 scale folded into columns
    return (w1t, w2t, b1.reshape(1, -1), b2.reshape(1, -1))


def se_reference(x_nchw, raw, eps=1e-5):
    """Pure-JAX reference mirroring the PyTorch SE module (f32, unfolded BN)."""
    w1, w2, g1, be1, m1, v1, g2, be2, m2, v2 = raw
    N, C, H, W = x_nchw.shape
    x = x_nchw.astype(jnp.float32)
    pooled = jnp.mean(x.reshape(N, C, H * W), axis=-1)            # avgpool -> [N, C]
    h = pooled @ jnp.transpose(w1)                                # conv1 -> [N, Cr]
    h = (h - m1) / jnp.sqrt(v1 + eps) * g1 + be1                  # bn1
    h = jnp.maximum(h, 0.0)                                       # relu
    y = h @ jnp.transpose(w2)                                     # conv2 -> [N, C]
    y = (y - m2) / jnp.sqrt(v2 + eps) * g2 + be2                  # bn2
    y = y * jnp.clip(y + 3.0, 0.0, 6.0) / 6.0                     # hswish
    return y.reshape(N, C, 1, 1)


if __name__ == "__main__":
    key = jax.random.PRNGKey(0)
    k_x1, k_p1, k_x2, k_p2 = jax.random.split(key, 4)

    # Case 1: small SE block, N=2 -> nb=1, 2 parallel grid steps.
    N, C, H, W = 2, 32, 16, 16           # in_dim=32, reduction=4 -> hidden=8
    x1 = jax.random.normal(k_x1, (N, C, H, W), jnp.float32)
    raw1 = make_raw_params(k_p1, C, reduction=4)
    out1 = jax.block_until_ready(se_forward(x1, fold_params(raw1)))
    ref1 = se_reference(x1, raw1)
    assert out1.shape == (N, C, 1, 1)
    assert jnp.allclose(out1, ref1, atol=1e-5, rtol=1e-5), "case1 mismatch vs reference"

    # Case 2: HW not a multiple of 128 and ragged batch (N=3, nb=2 -> padded
    # last block, sliced off in the wrapper).
    N2, C2, H2, W2 = 3, 48, 24, 24       # HW=576, full-extent spatial block
    x2 = jax.random.normal(k_x2, (N2, C2, H2, W2), jnp.float32)
    raw2 = make_raw_params(k_p2, C2, reduction=4)
    out2 = jax.block_until_ready(se_forward(x2, fold_params(raw2)))
    ref2 = se_reference(x2, raw2)
    assert out2.shape == (N2, C2, 1, 1)
    assert jnp.allclose(out2, ref2, atol=1e-5, rtol=1e-5), "case2 mismatch vs reference"

    # Case 3: bf16 activations (halves HBM traffic; f32 accumulation inside).
    x3 = x1.astype(jnp.bfloat16)
    out3 = jax.block_until_ready(se_forward(x3, fold_params(raw1)))
    ref3 = se_reference(x3, raw1)
    assert out3.shape == (N, C, 1, 1)
    assert jnp.allclose(out3.astype(jnp.float32), ref3, atol=5e-2, rtol=5e-2), \
        "case3 (bf16) mismatch vs reference"

    print("KERNEL_OK")
</pallas_src>

<mosaic_0001>
module attributes {stable_mosaic.version = 11 : i64} {
  func.func @se_kernel(%arg0: i32, %arg1: memref<1x32x256xf32, #tpu.memory_space<vmem>>, %arg2: memref<32x8xf32, #tpu.memory_space<vmem>>, %arg3: memref<8x32xf32, #tpu.memory_space<vmem>>, %arg4: memref<1x8xf32, #tpu.memory_space<vmem>>, %arg5: memref<1x32xf32, #tpu.memory_space<vmem>>, %arg6: memref<1x1x32xf32, #tpu.memory_space<vmem>>) attributes {dimension_semantics = [#tpu.dimension_semantics<parallel>], iteration_bounds = array<i64: 2>, scalar_prefetch = 0 : i64, scratch_operands = 0 : i64, tpu.core_type = #tpu.core_type<tc>, window_params = [{transform_indices = @transform_0, window_bounds = array<i64: 1, 32, 256>}, {pipeline_mode = #tpu.pipeline_mode<synchronous>, transform_indices = @transform_1, window_bounds = array<i64: 32, 8>}, {pipeline_mode = #tpu.pipeline_mode<synchronous>, transform_indices = @transform_2, window_bounds = array<i64: 8, 32>}, {pipeline_mode = #tpu.pipeline_mode<synchronous>, transform_indices = @transform_3, window_bounds = array<i64: 1, 8>}, {pipeline_mode = #tpu.pipeline_mode<synchronous>, transform_indices = @transform_4, window_bounds = array<i64: 1, 32>}, {transform_indices = @transform_5, window_bounds = array<i64: 1, 1, 32>}]} {
    %c0 = arith.constant 0 : index
    %c0_0 = arith.constant 0 : index
    %c0_1 = arith.constant 0 : index
    %0 = vector.load %arg1[%c0, %c0_0, %c0_1] : memref<1x32x256xf32, #tpu.memory_space<vmem>>, vector<1x32x256xf32>
    %cst = arith.constant dense<0.000000e+00> : vector<1x32xf32>
    %1 = vector.multi_reduction <add>, %0, %cst [2] : vector<1x32x256xf32> to vector<1x32xf32>
    %cst_2 = arith.constant 3.906250e-03 : f32
    %2 = vector.broadcast %cst_2 : f32 to vector<1x32xf32>
    %3 = arith.mulf %1, %2 : vector<1x32xf32>
    %c0_3 = arith.constant 0 : index
    %c0_4 = arith.constant 0 : index
    %4 = vector.load %arg2[%c0_3, %c0_4] : memref<32x8xf32, #tpu.memory_space<vmem>>, vector<32x8xf32>
    %cst_5 = arith.constant dense<0.000000e+00> : vector<1x8xf32>
    %5 = tpu.matmul %3, %4, %cst_5 {dimension_numbers = #tpu.dot_dimension_numbers<[1], [0], [0], [1], [0, 0, 1, 1], [], []>} : vector<1x32xf32>, vector<32x8xf32>, vector<1x8xf32> -> vector<1x8xf32>
    %c0_6 = arith.constant 0 : index
    %c0_7 = arith.constant 0 : index
    %6 = vector.load %arg4[%c0_6, %c0_7] : memref<1x8xf32, #tpu.memory_space<vmem>>, vector<1x8xf32>
    %7 = arith.addf %5, %6 : vector<1x8xf32>
    %cst_8 = arith.constant 0.000000e+00 : f32
    %8 = vector.broadcast %cst_8 : f32 to vector<1x8xf32>
    %9 = arith.maximumf %7, %8 : vector<1x8xf32>
    %c0_9 = arith.constant 0 : index
    %c0_10 = arith.constant 0 : index
    %10 = vector.load %arg3[%c0_9, %c0_10] : memref<8x32xf32, #tpu.memory_space<vmem>>, vector<8x32xf32>
    %cst_11 = arith.constant dense<0.000000e+00> : vector<1x32xf32>
    %11 = tpu.matmul %9, %10, %cst_11 {dimension_numbers = #tpu.dot_dimension_numbers<[1], [0], [0], [1], [0, 0, 1, 1], [], []>} : vector<1x8xf32>, vector<8x32xf32>, vector<1x32xf32> -> vector<1x32xf32>
    %c0_12 = arith.constant 0 : index
    %c0_13 = arith.constant 0 : index
    %12 = vector.load %arg5[%c0_12, %c0_13] : memref<1x32xf32, #tpu.memory_space<vmem>>, vector<1x32xf32>
    %13 = arith.addf %11, %12 : vector<1x32xf32>
    %cst_14 = arith.constant 3.000000e+00 : f32
    %14 = vector.broadcast %cst_14 : f32 to vector<1x32xf32>
    %15 = arith.addf %13, %14 : vector<1x32xf32>
    %cst_15 = arith.constant 0.000000e+00 : f32
    %cst_16 = arith.constant 6.000000e+00 : f32
    %16 = vector.broadcast %cst_15 : f32 to vector<1x32xf32>
    %17 = arith.maximumf %16, %15 : vector<1x32xf32>
    %18 = vector.broadcast %cst_16 : f32 to vector<1x32xf32>
    %19 = arith.minimumf %18, %17 : vector<1x32xf32>
    %cst_17 = arith.constant 0.166666672 : f32
    %20 = vector.broadcast %cst_17 : f32 to vector<1x32xf32>
    %21 = arith.mulf %19, %20 : vector<1x32xf32>
    %22 = arith.mulf %13, %21 : vector<1x32xf32>
    %c0_18 = arith.constant 0 : index
    %c0_19 = arith.constant 0 : index
    %c0_20 = arith.constant 0 : index
    %23 = vector.load %arg6[%c0_18, %c0_19, %c0_20] : memref<1x1x32xf32, #tpu.memory_space<vmem>>, vector<1x1x32xf32>
    %24 = vector.shape_cast %23 : vector<1x1x32xf32> to vector<1x32xf32>
    %25 = vector.shape_cast %22 : vector<1x32xf32> to vector<1x1x32xf32>
    tpu.vector_store %arg6[%c0_18, %c0_19, %c0_20], %25 {strides = array<i32>} : memref<1x1x32xf32, #tpu.memory_space<vmem>>, vector<1x1x32xf32>,
    return
  }
  func.func @transform_0(%arg0: i32) -> (i32, i32, i32) {
    %c0_i32 = arith.constant 0 : i32
    %c0_i32_0 = arith.constant 0 : i32
    %c0_i32_1 = arith.constant 0 : i32
    return %arg0, %c0_i32, %c0_i32_0 : i32, i32, i32
  }
  func.func @transform_1(%arg0: i32) -> (i32, i32) {
    %c0_i32 = arith.constant 0 : i32
    %c0_i32_0 = arith.constant 0 : i32
    %c0_i32_1 = arith.constant 0 : i32
    return %c0_i32, %c0_i32_0 : i32, i32
  }
  func.func @transform_2(%arg0: i32) -> (i32, i32) {
    %c0_i32 = arith.constant 0 : i32
    %c0_i32_0 = arith.constant 0 : i32
    %c0_i32_1 = arith.constant 0 : i32
    return %c0_i32, %c0_i32_0 : i32, i32
  }
  func.func @transform_3(%arg0: i32) -> (i32, i32) {
    %c0_i32 = arith.constant 0 : i32
    %c0_i32_0 = arith.constant 0 : i32
    %c0_i32_1 = arith.constant 0 : i32
    return %c0_i32, %c0_i32_0 : i32, i32
  }
  func.func @transform_4(%arg0: i32) -> (i32, i32) {
    %c0_i32 = arith.constant 0 : i32
    %c0_i32_0 = arith.constant 0 : i32
    %c0_i32_1 = arith.constant 0 : i32
    return %c0_i32, %c0_i32_0 : i32, i32
  }
  func.func @transform_5(%arg0: i32) -> (i32, i32, i32) {
    %c0_i32 = arith.constant 0 : i32
    %c0_i32_0 = arith.constant 0 : i32
    %c0_i32_1 = arith.constant 0 : i32
    return %arg0, %c0_i32, %c0_i32_0 : i32, i32, i32
  }
}

</mosaic_0001>

<llo_original>
// kernel: tpu_custom_call.1
$region0: #{tpu_custom_call.1}
  #allocation0 [shape = 'u32[]', space=smem, size = 0x4, offset = 0x4, fixed_abs, tag = 'smem constant byte address 0x4 - core index']
  #allocation1 [shape = 'u32[144,128]{1,0:T(1,128)}', space=vmem, size = 0x12000, scoped, tag = 'internal scratch']
  %s0 = inlined_call_operand.hbm [shape: f32[2,32,256], index: 0, kind: input, shape index: {}]
  %s1 = inlined_call_operand.vmem [shape: f32[32,8], index: 1, kind: input, shape index: {}]
  %s2 = inlined_call_operand.vmem [shape: f32[8,32], index: 2, kind: input, shape index: {}]
  %s3 = inlined_call_operand.vmem [shape: f32[1,8], index: 3, kind: input, shape index: {}]
  %s4 = inlined_call_operand.vmem [shape: f32[1,32], index: 4, kind: input, shape index: {}]
  %s5 = inlined_call_operand.hbm [shape: f32[2,1,32], index: 5, kind: output, shape index: {}]
  %s6 = sld [smem:[#allocation0]]
  $region57: #{tpu_custom_call.1} parent=0
    _
  %s8 = ssub.s32 1, %s6
  %s9 = scalar_select 0, %s8, %s6
  $region1: #{tpu_custom_call.1} parent=0
    #allocation2 [shape = 'u8[65536]{0}', space=vmem, size = 0x10000, scoped, tag = 'input window, operand 0']
    #allocation3 [shape = 's32[2]{0}', space=sflag, size = 0x8, scoped, tag = 'scoped memory for tpu_custom_call.1']
    #allocation4 [shape = 's32[2]{0}', space=sflag, size = 0x8, scoped, tag = 'scoped memory for tpu_custom_call.1']
    #allocation5 [shape = 'u8[1024]{0}', space=vmem, size = 0x400, scoped, tag = 'output window, operand 0']
    %10 = vsyncpa [#allocation3], 0
    %s11 = scalar_lea.sflag [#allocation3], 1
    %12 = vsyncpa %s11, 0
    %13 = vsyncpa [#allocation4], 0
    %s14 = scalar_lea.sflag [#allocation4], 1
    %15 = vsyncpa %s14, 0
    loop: start=0, step=1, limit=4
    $region2: #{tpu_custom_call.1} parent=1 // loop_pre_header
      _
    $region3: #{tpu_custom_call.1} parent=1 // loop_header
      %s17 = sphi 0, %s21
      %p18 = scmp.ge.s32.totalorder %s17, 4
      %s27 = sphi 0, %s29
      %s30 = sphi 0, %s27
      %s31 = sphi 0, %s30
      %s47 = sphi 0, %s31
      %s51 = sphi 0, %s51
      %s53 = sphi 0, %s51
      %s54 = sphi 0, %s53
      %s68 = sphi 0, %s54
      %s72 = sphi 0, %s72
      %s74 = sphi 0, %s72
      %s75 = sphi 0, %s74
      %s89 = sphi 0, %s75
      %s93 = sphi 0, %s93
      %s95 = sphi 0, %s93
      %s96 = sphi 0, %s95
      %s110 = sphi 0, %s96
      %s114 = sphi 0, %s114
      %s116 = sphi 0, %s114
      %s117 = sphi 0, %s116
      %s131 = sphi 0, %s117
      %s137 = sphi 0, %s139
      %s140 = sphi 0, %s137
      %s141 = sphi 0, %s140
      %s157 = sphi 0, %s141
    $region4: #{tpu_custom_call.1} parent=1 // loop_header_branch
      %20 = sbr.rel (%p18) target = $region8
    $region5: #{tpu_custom_call.1} parent=1 // loop_body
      %s22 = ssub.s32 %s17, 1
      %s23 = ssub.s32 %s17, 2
      %s24 = sadd.s32 %s17, 1
      %s25 = ssub.s32 %s17, %s24
      %p26 = scmp.eq.s32.totalorder %s25, 0
      %s28 = sadd.s32 %s27, 1
      %s29 = scalar_select %p26, %s27, %s28
      %p32 = pneg %p26
      %p33 = scmp.eq.s32.totalorder %s17, 1
      %p34 = por %p32, %p33
      %p35 = scmp.ne.s32.totalorder %s27, %s30
      %p36 = scmp.eq.s32.totalorder %s17, 0
      %p37 = por %p35, %p36
      %p38 = scmp.ne.s32.totalorder %s27, %s30
      %p39 = scmp.eq.s32.totalorder %s22, 1
      %p40 = por %p38, %p39
      %p41 = scmp.ne.s32.totalorder %s30, %s31
      %p42 = scmp.eq.s32.totalorder %s22, 0
      %p43 = por %p41, %p42
      %p44 = scmp.ne.s32.totalorder %s30, %s31
      %p45 = scmp.eq.s32.totalorder %s23, 1
      %p46 = por %p44, %p45
      %p48 = scmp.ne.s32.totalorder %s31, %s47
      %p49 = scmp.eq.s32.totalorder %s23, 0
      %p50 = por %p48, %p49
      %s52 = sadd.s32 %s51, 1
      %p55 = scmp.eq.s32.totalorder %s17, 1
      %p56 = scmp.ne.s32.totalorder %s51, %s53
      %p57 = scmp.eq.s32.totalorder %s17, 0
      %p58 = por %p56, %p57
      %p59 = scmp.ne.s32.totalorder %s51, %s53
      %p60 = scmp.eq.s32.totalorder %s22, 1
      %p61 = por %p59, %p60
      %p62 = scmp.ne.s32.totalorder %s53, %s54
      %p63 = scmp.eq.s32.totalorder %s22, 0
      %p64 = por %p62, %p63
      %p65 = scmp.ne.s32.totalorder %s53, %s54
      %p66 = scmp.eq.s32.totalorder %s23, 1
      %p67 = por %p65, %p66
      %p69 = scmp.ne.s32.totalorder %s54, %s68
      %p70 = scmp.eq.s32.totalorder %s23, 0
      %p71 = por %p69, %p70
      %s73 = sadd.s32 %s72, 1
      %p76 = scmp.eq.s32.totalorder %s17, 1
      %p77 = scmp.ne.s32.totalorder %s72, %s74
      %p78 = scmp.eq.s32.totalorder %s17, 0
      %p79 = por %p77, %p78
      %p80 = scmp.ne.s32.totalorder %s72, %s74
      %p81 = scmp.eq.s32.totalorder %s22, 1
      %p82 = por %p80, %p81
      %p83 = scmp.ne.s32.totalorder %s74, %s75
      %p84 = scmp.eq.s32.totalorder %s22, 0
      %p85 = por %p83, %p84
      %p86 = scmp.ne.s32.totalorder %s74, %s75
      %p87 = scmp.eq.s32.totalorder %s23, 1
      %p88 = por %p86, %p87
      %p90 = scmp.ne.s32.totalorder %s75, %s89
      %p91 = scmp.eq.s32.totalorder %s23, 0
      %p92 = por %p90, %p91
      %s94 = sadd.s32 %s93, 1
      %p97 = scmp.eq.s32.totalorder %s17, 1
      %p98 = scmp.ne.s32.totalorder %s93, %s95
      %p99 = scmp.eq.s32.totalorder %s17, 0
      %p100 = por %p98, %p99
      %p101 = scmp.ne.s32.totalorder %s93, %s95
      %p102 = scmp.eq.s32.totalorder %s22, 1
      %p103 = por %p101, %p102
      %p104 = scmp.ne.s32.totalorder %s95, %s96
      %p105 = scmp.eq.s32.totalorder %s22, 0
      %p106 = por %p104, %p105
      %p107 = scmp.ne.s32.totalorder %s95, %s96
      %p108 = scmp.eq.s32.totalorder %s23, 1
      %p109 = por %p107, %p108
      %p111 = scmp.ne.s32.totalorder %s96, %s110
      %p112 = scmp.eq.s32.totalorder %s23, 0
      %p113 = por %p111, %p112
      %s115 = sadd.s32 %s114, 1
      %p118 = scmp.eq.s32.totalorder %s17, 1
      %p119 = scmp.ne.s32.totalorder %s114, %s116
      %p120 = scmp.eq.s32.totalorder %s17, 0
      %p121 = por %p119, %p120
      %p122 = scmp.ne.s32.totalorder %s114, %s116
      %p123 = scmp.eq.s32.totalorder %s22, 1
      %p124 = por %p122, %p123
      %p125 = scmp.ne.s32.totalorder %s116, %s117
      %p126 = scmp.eq.s32.totalorder %s22, 0
      %p127 = por %p125, %p126
      %p128 = scmp.ne.s32.totalorder %s116, %s117
      %p129 = scmp.eq.s32.totalorder %s23, 1
      %p130 = por %p128, %p129
      %p132 = scmp.ne.s32.totalorder %s117, %s131
      %p133 = scmp.eq.s32.totalorder %s23, 0
      %p134 = por %p132, %p133
      %s135 = ssub.s32 %s17, %s24
      %p136 = scmp.eq.s32.totalorder %s135, 0
      %s138 = sadd.s32 %s137, 1
      %s139 = scalar_select %p136, %s137, %s138
      %p142 = pneg %p136
      %p143 = scmp.eq.s32.totalorder %s17, 1
      %p144 = por %p142, %p143
      %p145 = scmp.ne.s32.totalorder %s137, %s140
      %p146 = scmp.eq.s32.totalorder %s17, 0
      %p147 = por %p145, %p146
      %p148 = scmp.ne.s32.totalorder %s137, %s140
      %p149 = scmp.eq.s32.totalorder %s22, 1
      %p150 = por %p148, %p149
      %p151 = scmp.ne.s32.totalorder %s140, %s141
      %p152 = scmp.eq.s32.totalorder %s22, 0
      %p153 = por %p151, %p152
      %p154 = scmp.ne.s32.totalorder %s140, %s141
      %p155 = scmp.eq.s32.totalorder %s23, 1
      %p156 = por %p154, %p155
      %p158 = scmp.ne.s32.totalorder %s141, %s157
      %p159 = scmp.eq.s32.totalorder %s23, 0
      %p160 = por %p158, %p159
      %p161 = scmp.le.s32.totalorder 1, %s17
      %p162 = scmp.lt.s32.totalorder %s17, 3
      %p163 = pnand %p161, %p162
      %p164 = pneg %p163
      // Predicated region
      $region9: #{tpu_custom_call.1} parent=5 // pred_check
        _
      $region10: #{tpu_custom_call.1} parent=5 // pred_check_branch
        %166 = sbr.rel (%p163) target = $region12
      $region11: #{tpu_custom_call.1} parent=5 // pred_region
        %s167 = ssub.s32 %s17, 1
        // Predicated region
        $region13: #{tpu_custom_call.1} parent=11 // pred_check
          %p168 = pneg %p64
        $region14: #{tpu_custom_call.1} parent=11 // pred_check_branch
          %170 = sbr.rel (%p168) target = $region16
        $region15: #{tpu_custom_call.1} parent=11 // pred_region
          _
        $region16: #{tpu_custom_call.1} parent=11 // pred_fallthru
          _
        // Predicated region
        $region17: #{tpu_custom_call.1} parent=11 // pred_check
          %p171 = pneg %p85
        $region18: #{tpu_custom_call.1} parent=11 // pred_check_branch
          %173 = sbr.rel (%p171) target = $region20
        $region19: #{tpu_custom_call.1} parent=11 // pred_region
          _
        $region20: #{tpu_custom_call.1} parent=11 // pred_fallthru
          _
        // Predicated region
        $region21: #{tpu_custom_call.1} parent=11 // pred_check
          %p174 = pneg %p106
        $region22: #{tpu_custom_call.1} parent=11 // pred_check_branch
          %176 = sbr.rel (%p174) target = $region24
        $region23: #{tpu_custom_call.1} parent=11 // pred_region
          _
        $region24: #{tpu_custom_call.1} parent=11 // pred_fallthru
          _
        // Predicated region
        $region25: #{tpu_custom_call.1} parent=11 // pred_check
          %p177 = pneg %p127
        $region26: #{tpu_custom_call.1} parent=11 // pred_check_branch
          %179 = sbr.rel (%p177) target = $region28
        $region27: #{tpu_custom_call.1} parent=11 // pred_region
          _
        $region28: #{tpu_custom_call.1} parent=11 // pred_fallthru
          _
      $region12: #{tpu_custom_call.1} parent=5 // pred_fallthru
        _
      %p180 = scmp.lt.s32.totalorder %s17, 2
      // Predicated region
      $region29: #{tpu_custom_call.1} parent=5 // pred_check
        %p181 = pneg %p180
      $region30: #{tpu_custom_call.1} parent=5 // pred_check_branch
        %183 = sbr.rel (%p181) target = $region32
      $region31: #{tpu_custom_call.1} parent=5 // pred_region
        // Predicated region
        $region33: #{tpu_custom_call.1} parent=31 // pred_check
          %p184 = pneg %p37
        $region34: #{tpu_custom_call.1} parent=31 // pred_check_branch
          %186 = sbr.rel (%p184) target = $region36
        $region35: #{tpu_custom_call.1} parent=31 // pred_region
          %s187 = sand.u32 %s27, 1
          %s188 = scalar_lea.sflag [#allocation3], %s187
          %s189 = sand.u32 %s27, 1
          %s190 = smul.addr %s189, 64
          %s191 = scalar_lea.vmem [#allocation2], %s190
          %s193 = ssub.s32 1024, 1024
          %194 = vsyncadd %s188, %s193
          %s195 = smul.addr %s17, 8
          %s196 = smul.addr %s195, 128
          %s197 = scalar_lea.hbm %s0, %s196
          %s198 = sshll.u32 %s191, 4
          %s199 = int_to_ptr.vmem [resolvable:$true] %s198
          %204 = dma.hbm_to_vmem [thread:$0]  %s197, 1024, %s199, %s188, 256, 256, 16
        $region36: #{tpu_custom_call.1} parent=31 // pred_fallthru
          _
      $region32: #{tpu_custom_call.1} parent=5 // pred_fallthru
        _
      %p205 = scmp.le.s32.totalorder 1, %s17
      %p206 = scmp.lt.s32.totalorder %s17, 3
      %p207 = pnand %p205, %p206
      %p208 = pneg %p207
      // Predicated region
      $region37: #{tpu_custom_call.1} parent=5 // pred_check
        _
      $region38: #{tpu_custom_call.1} parent=5 // pred_check_branch
        %210 = sbr.rel (%p207) target = $region40
      $region39: #{tpu_custom_call.1} parent=5 // pred_region
        %s211 = ssub.s32 %s17, 1
        %s212 = sand.u32 %s30, 1
        %s213 = scalar_lea.sflag [#allocation3], %s212
        %s214 = sand.u32 %s30, 1
        %s215 = smul.addr %s214, 64
        %s216 = scalar_lea.vmem [#allocation2], %s215
        // Predicated region
        $region41: #{tpu_custom_call.1} parent=39 // pred_check
          %p217 = pneg %p43
        $region42: #{tpu_custom_call.1} parent=39 // pred_check_branch
          %219 = sbr.rel (%p217) target = $region44
        $region43: #{tpu_custom_call.1} parent=39 // pred_region
          %220 = dma.done %s213, 1024
        $region44: #{tpu_custom_call.1} parent=39 // pred_fallthru
          _
        %s221 = sand.u32 %s30, 1
        %s222 = scalar_lea.sflag [#allocation3], %s221
        %s223 = sand.u32 %s30, 1
        %s224 = smul.addr %s223, 64
        %s225 = scalar_lea.vmem [#allocation2], %s224
        %p226 = pneg %p43
        %p227 = pneg %p40
        %p228 = pneg %p64
        %p229 = pneg %p61
        %p230 = pneg %p85
        %p231 = pneg %p82
        %p232 = pneg %p106
        %p233 = pneg %p103
        %p234 = pneg %p127
        %p235 = pneg %p124
        %p236 = pneg %p153
        %p237 = pneg %p150
        %s238 = sand.u32 %s140, 1
        %s239 = scalar_lea.sflag [#allocation4], %s238
        %s240 = sand.u32 %s140, 1
        %s241 = scalar_lea.vmem [#allocation5], %s240
        %v242 = vld [vmem:[%s216] sm:$0xff]
        %v243 = vld [vmem:[%s216 + $0x8] sm:$0xff]
        %v244 = vld [vmem:[%s216 + $0x10] sm:$0xff]
        %v245 = vld [vmem:[%s216 + $0x18] sm:$0xff]
        %v246 = vld [vmem:[%s216 + $0x20] sm:$0xff]
        %v247 = vld [vmem:[%s216 + $0x28] sm:$0xff]
        %v248 = vld [vmem:[%s216 + $0x30] sm:$0xff]
        %v249 = vld [vmem:[%s216 + $0x38] sm:$0xff]
        %v250 = vadd.f32 %v242, %v243
        %251 = vadd.xlane.f32.xlu0 %v250
        %v252 = vpop.xlane.xlu0 %251
        %v253 = vadd.f32 %v244, %v245
        %254 = vadd.xlane.f32.xlu0 %v253
        %v255 = vpop.xlane.xlu0 %254
        %v256 = vadd.f32 %v246, %v247
        %257 = vadd.xlane.f32.xlu0 %v256
        %v258 = vpop.xlane.xlu0 %257
        %v259 = vadd.f32 %v248, %v249
        %260 = vadd.xlane.f32.xlu0 %v259
        %v261 = vpop.xlane.xlu0 %260
        %v262 = vmul.f32 %v252, 0.00390625
        %v263 = vmul.f32 %v255, 0.00390625
        %v264 = vmul.f32 %v258, 0.00390625
        %v265 = vmul.f32 %v261, 0.00390625
        %v266 = vld [vmem:[%s1] sm:$0xff]
        %v267 = vld [vmem:[%s1 + $0x8] sm:$0xff]
        %v268 = vld [vmem:[%s1 + $0x10] sm:$0xff]
        %v269 = vld [vmem:[%s1 + $0x18] sm:$0xff]
        %v270 = vld [vmem:[%s3] sm:$0x1]
        %v275 = vlaneseq
        %v276 = vand.u32 %v275, 127
        %v277 = vlaneseq
        %v278 = vshrl.u32 %v277, 7
        %v279 = vsub.s32 %v276, %v278
        %v280 = vrot.slane %v262, %v279
        %v281 = vadd.s32 %v276, 4294967288
        %v282 = vlaneseq
        %v283 = vshrl.u32 %v282, 7
        %v284 = vsub.s32 %v281, %v283
        %v285 = vrot.slane %v263, %v284
        %vm286 = vcmask 130112
        %v287 = vsel %vm286, %v285, %v280
        %v288 = vadd.s32 %v276, 4294967280
        %v289 = vlaneseq
        %v290 = vshrl.u32 %v289, 7
        %v291 = vsub.s32 %v288, %v290
        %v292 = vrot.slane %v264, %v291
        %vm293 = vcmask 195712
        %v294 = vsel %vm293, %v292, %v287
        %v295 = vadd.s32 %v276, 4294967272
        %v296 = vlaneseq
        %v297 = vshrl.u32 %v296, 7
        %v298 = vsub.s32 %v295, %v297
        %v299 = vrot.slane %v265, %v298
        %vm300 = vcmask 261312
        %v301 = vsel %vm300, %v299, %v294
        %vm302 = vcmask 261120
        %v303 = vsel %vm302, %v301, 0
        %305 = vmatprep.subr.mxu0 0.0
        %306 = vmatpush1.msra.mxu0 %v266
        %307 = vmatprep.subr.mxu0 0.0
        %308 = vmatpush1.msra.mxu0 %v267
        %309 = vmatprep.subr.mxu0 0.0
        %310 = vmatpush1.msra.mxu0 %v268
        %311 = vmatprep.subr.mxu0 0.0
        %312 = vmatpush1.msra.mxu0 %v269
        %313 = vmatprep.subr.mxu0 0.0
        %314 = vmatpush1.msra.mxu0 0.0
        %315 = vmatprep.subr.mxu0 0.0
        %316 = vmatpush1.msra.mxu0 0.0
        %317 = vmatprep.subr.mxu0 0.0
        %318 = vmatpush1.msra.mxu0 0.0
        %319 = vmatprep.subr.mxu0 0.0
        %320 = vmatpush1.msra.mxu0 0.0
        %321 = vmatprep.subr.mxu0 0.0
        %322 = vmatpush1.msra.mxu0 0.0
        %323 = vmatprep.subr.mxu0 0.0
        %324 = vmatpush1.msra.mxu0 0.0
        %325 = vmatprep.subr.mxu0 0.0
        %326 = vmatpush1.msra.mxu0 0.0
        %327 = vmatprep.subr.mxu0 0.0
        %328 = vmatpush1.msra.mxu0 0.0
        %329 = vmatprep.subr.mxu0 0.0
        %330 = vmatpush1.msra.mxu0 0.0
        %331 = vmatprep.subr.mxu0 0.0
        %332 = vmatpush1.msra.mxu0 0.0
        %333 = vmatprep.subr.mxu0 0.0
        %334 = vmatpush1.msra.mxu0 0.0
        %335 = vmatprep.subr.mxu0 0.0
        %336 = vmatpush1.msra.mxu0 0.0
        %337 = vmatprep.subr.mxu0 0.0
        %338 = vmatpush1.msra.mxu0 0.0
        %339 = vmatprep.subr.mxu0 0.0
        %340 = vmatpush1.msra.mxu0 0.0
        %341 = vmatprep.subr.mxu0 0.0
        %342 = vmatpush1.msra.mxu0 0.0
        %343 = vmatprep.subr.mxu0 0.0
        %344 = vmatpush1.msra.mxu0 0.0
        %345 = vmatprep.subr.mxu0 0.0
        %346 = vmatpush1.msra.mxu0 0.0
        %347 = vmatprep.subr.mxu0 0.0
        %348 = vmatpush1.msra.mxu0 0.0
        %349 = vmatprep.subr.mxu0 0.0
        %350 = vmatpush1.msra.mxu0 0.0
        %351 = vmatprep.subr.mxu0 0.0
        %352 = vmatpush1.msra.mxu0 0.0
        %353 = vmatprep.subr.mxu0 0.0
        %354 = vmatpush1.msra.mxu0 0.0
        %355 = vmatprep.subr.mxu0 0.0
        %356 = vmatpush1.msra.mxu0 0.0
        %357 = vmatprep.subr.mxu0 0.0
        %358 = vmatpush1.msra.mxu0 0.0
        %359 = vmatprep.subr.mxu0 0.0
        %360 = vmatpush1.msra.mxu0 0.0
        %361 = vmatprep.subr.mxu0 0.0
        %362 = vmatpush1.msra.mxu0 0.0
        %363 = vmatprep.subr.mxu0 0.0
        %364 = vmatpush1.msra.mxu0 0.0
        %365 = vmatprep.subr.mxu0 0.0
        %366 = vmatpush1.msra.mxu0 0.0
        %367 = vmatprep.subr.mxu0 0.0
        %368 = vmatpush1.msra.mxu0 0.0
        %369 = vmatprep.mubr.f32.mxu0 0.0
        %370 = vmatmul.mubr.f32.gmra.mrb[0].mxu0 %v303
        %v371 = vpop.f32.mrb[0].mxu0
        %v372 = vadd.f32 %v270, %v371
        %v373 = vpop.f32.mrb[0].mxu0
        %374 = vdwg.mxu0
        %v375 = vmax.f32 %v372, 0.0
        %v376 = vld [vmem:[%s2] sm:$0xff]
        %v377 = vld [vmem:[%s4] sm:$0x1]
        %vm378 = vcmask 64512
        %v380 = vsel %vm378, %v375, 0
        %382 = vmatprep.subr.mxu0 0.0
        %383 = vmatpush1.msra.mxu0 %v376
        %384 = vmatprep.subr.mxu0 0.0
        %385 = vmatpush1.msra.mxu0 0.0
        %386 = vmatprep.subr.mxu0 0.0
        %387 = vmatpush1.msra.mxu0 0.0
        %388 = vmatprep.subr.mxu0 0.0
        %389 = vmatpush1.msra.mxu0 0.0
        %390 = vmatprep.subr.mxu0 0.0
        %391 = vmatpush1.msra.mxu0 0.0
        %392 = vmatprep.subr.mxu0 0.0
        %393 = vmatpush1.msra.mxu0 0.0
        %394 = vmatprep.subr.mxu0 0.0
        %395 = vmatpush1.msra.mxu0 0.0
        %396 = vmatprep.subr.mxu0 0.0
        %397 = vmatpush1.msra.mxu0 0.0
        %398 = vmatprep.subr.mxu0 0.0
        %399 = vmatpush1.msra.mxu0 0.0
        %400 = vmatprep.subr.mxu0 0.0
        %401 = vmatpush1.msra.mxu0 0.0
        %402 = vmatprep.subr.mxu0 0.0
        %403 = vmatpush1.msra.mxu0 0.0
        %404 = vmatprep.subr.mxu0 0.0
        %405 = vmatpush1.msra.mxu0 0.0
        %406 = vmatprep.subr.mxu0 0.0
        %407 = vmatpush1.msra.mxu0 0.0
        %408 = vmatprep.subr.mxu0 0.0
        %409 = vmatpush1.msra.mxu0 0.0
        %410 = vmatprep.subr.mxu0 0.0
        %411 = vmatpush1.msra.mxu0 0.0
        %412 = vmatprep.subr.mxu0 0.0
        %413 = vmatpush1.msra.mxu0 0.0
        %414 = vmatprep.subr.mxu0 0.0
        %415 = vmatpush1.msra.mxu0 0.0
        %416 = vmatprep.subr.mxu0 0.0
        %417 = vmatpush1.msra.mxu0 0.0
        %418 = vmatprep.subr.mxu0 0.0
        %419 = vmatpush1.msra.mxu0 0.0
        %420 = vmatprep.subr.mxu0 0.0
        %421 = vmatpush1.msra.mxu0 0.0
        %422 = vmatprep.subr.mxu0 0.0
        %423 = vmatpush1.msra.mxu0 0.0
        %424 = vmatprep.subr.mxu0 0.0
        %425 = vmatpush1.msra.mxu0 0.0
        %426 = vmatprep.subr.mxu0 0.0
        %427 = vmatpush1.msra.mxu0 0.0
        %428 = vmatprep.subr.mxu0 0.0
        %429 = vmatpush1.msra.mxu0 0.0
        %430 = vmatprep.subr.mxu0 0.0
        %431 = vmatpush1.msra.mxu0 0.0
        %432 = vmatprep.subr.mxu0 0.0
        %433 = vmatpush1.msra.mxu0 0.0
        %434 = vmatprep.subr.mxu0 0.0
        %435 = vmatpush1.msra.mxu0 0.0
        %436 = vmatprep.subr.mxu0 0.0
        %437 = vmatpush1.msra.mxu0 0.0
        %438 = vmatprep.subr.mxu0 0.0
        %439 = vmatpush1.msra.mxu0 0.0
        %440 = vmatprep.subr.mxu0 0.0
        %441 = vmatpush1.msra.mxu0 0.0
        %442 = vmatprep.subr.mxu0 0.0
        %443 = vmatpush1.msra.mxu0 0.0
        %444 = vmatprep.subr.mxu0 0.0
        %445 = vmatpush1.msra.mxu0 0.0
        %446 = vmatprep.mubr.f32.mxu0 0.0
        %447 = vmatmul.mubr.f32.gmra.mrb[0].mxu0 %v380
        %v448 = vpop.f32.mrb[0].mxu0
        %v449 = vadd.f32 %v377, %v448
        %v450 = vpop.f32.mrb[0].mxu0
        %451 = vdwg.mxu0
        %v452 = vadd.f32 %v449, 3.0
        %v453 = vmax.f32 %v452, 0.0
        %v454 = vmin.f32 %v453, 6.0
        %v455 = vmul.f32 %v454, 0.16666667
        %v456 = vmul.f32 %v449, %v455
        %vm457 = vcmask 253952
        %458 = vst.msk [vmem:[%s241] sm:$0x1] %vm457, %v456
        %s459 = sand.u32 %s140, 1
        %s460 = scalar_lea.sflag [#allocation4], %s459
        %s461 = sand.u32 %s140, 1
        %s462 = scalar_lea.vmem [#allocation5], %s461
        // Predicated region
        $region45: #{tpu_custom_call.1} parent=39 // pred_check
          %p463 = pneg %p150
        $region46: #{tpu_custom_call.1} parent=39 // pred_check_branch
          %465 = sbr.rel (%p463) target = $region48
        $region47: #{tpu_custom_call.1} parent=39 // pred_region
          %s467 = ssub.s32 16, 16
          %468 = vsyncadd %s460, %s467
          %s469 = smul.addr %s22, 16
          %s470 = scalar_lea.hbm %s5, %s469
          %s472 = sshll.u32 %s462, 4
          %s473 = int_to_ptr.vmem [resolvable:$true] %s472
          %475 = dma.vmem_to_hbm [thread:$0]  %s473, 16, %s470, %s460
        $region48: #{tpu_custom_call.1} parent=39 // pred_fallthru
          _
      $region40: #{tpu_custom_call.1} parent=5 // pred_fallthru
        _
      %p476 = scmp.le.s32.totalorder 2, %s17
      // Predicated region
      $region49: #{tpu_custom_call.1} parent=5 // pred_check
        %p477 = pneg %p476
      $region50: #{tpu_custom_call.1} parent=5 // pred_check_branch
        %479 = sbr.rel (%p477) target = $region52
      $region51: #{tpu_custom_call.1} parent=5 // pred_region
        %s480 = ssub.s32 %s17, 2
        // Predicated region
        $region53: #{tpu_custom_call.1} parent=51 // pred_check
          %p481 = pneg %p156
        $region54: #{tpu_custom_call.1} parent=51 // pred_check_branch
          %483 = sbr.rel (%p481) target = $region56
        $region55: #{tpu_custom_call.1} parent=51 // pred_region
          %s484 = sand.u32 %s141, 1
          %s485 = scalar_lea.sflag [#allocation4], %s484
          %s486 = sand.u32 %s141, 1
          %s487 = scalar_lea.vmem [#allocation5], %s486
          %488 = dma.done %s485, 16
        $region56: #{tpu_custom_call.1} parent=51 // pred_fallthru
          _
      $region52: #{tpu_custom_call.1} parent=5 // pred_fallthru
        _
    $region6: #{tpu_custom_call.1} parent=1 // loop_footer
      %s21 = sadd.s32 1, %s17
    $region7: #{tpu_custom_call.1} parent=1 // loop_footer_branch
      %16 = sbr.rel target = $region3
    $region8: #{tpu_custom_call.1} parent=1 // loop_exit
      _
    %489 = vsyncpa [#allocation3], 1
    %s490 = scalar_lea.sflag [#allocation3], 1
    %491 = vsyncpa %s490, 1
    %492 = vsyncpa [#allocation4], 1
    %s493 = scalar_lea.sflag [#allocation4], 1
    %494 = vsyncpa %s493, 1

</llo_original>
